<compile_context>
chip_gen: v6e
topology: v6e:2x2x1
jax: 0.10.0
libtpu: 0.0.40
codegen_flags: <defaults>
</compile_context>

<pallas_src>
import functools

import jax
import jax.numpy as jnp
from jax.experimental import pallas as pl
from jax.experimental.pallas import tpu as pltpu


def _vmem_budget_bytes():
    """Generation-aware VMEM limit (~75% of per-core capacity: 64 MiB on v7x,
    128 MiB on v5e/v6e); falls back to the smallest (v7x) if unavailable."""
    try:
        cap = int(pltpu.get_tpu_info().vmem_capacity_bytes)
    except Exception:  # off-TPU / older jax
        cap = 64 * 1024 * 1024
    return max(32 * 1024 * 1024, min(cap * 3 // 4, 112 * 1024 * 1024))


_VMEM_LIMIT = _vmem_budget_bytes()


def _pick_tile(total, target):
    """Largest multiple-of-8 tile <= target that divides `total`, else `total`."""
    if total <= target:
        return total
    target = max(8, (target // 8) * 8)
    for cand in range(target, 7, -8):
        if total % cand == 0:
            return cand
    return total


def _mosaic_params(*semantics):
    return pltpu.CompilerParams(dimension_semantics=tuple(semantics),
                                vmem_limit_bytes=_VMEM_LIMIT)


# ----------------------------------------------------------------------------
# Kernel 1: Linear projection  y = x @ W + b  (nn.Linear), row-tiled, bf16 MXU.
# When Dout==32 the wrapper packs 4 consecutive tokens per output row via a
# block-diagonal weight so the HBM store is lane-dense (128 lanes).
# ----------------------------------------------------------------------------
def _linear_kernel(x_ref, w_ref, b_ref, o_ref):
    x = x_ref[...].astype(jnp.bfloat16)          # bf16 operands -> native MXU
    w = w_ref[...].astype(jnp.bfloat16)
    y = jnp.dot(x, w, preferred_element_type=jnp.float32) + b_ref[...]
    o_ref[...] = y.astype(o_ref.dtype)


def pallas_linear_packed(x, w, b, *, row_tile=2048):
    """x: [B, L, Din]; w: [Din, Dout]; b: [Dout] -> [B, L, Dout] f32."""
    B, L, Din = x.shape
    Dout = w.shape[1]
    T = B * L
    pack = 4 if (Dout * 4 == 128 and T % 4 == 0) else 1
    R = T // pack
    Dw, Dp = pack * Din, pack * Dout
    if pack > 1:
        # packed[r, k*Dout+c] = sum_d x[pack*r+k, d] * W[d, c]  (block diagonal)
        w_call = jnp.kron(jnp.eye(pack, dtype=w.dtype), w)       # (Dw, 128)
        b_call = jnp.tile(b, pack)
    else:
        w_call, b_call = w, b
    tR = _pick_tile(R, max(8, row_tile // pack))
    y = pl.pallas_call(
        _linear_kernel,
        out_shape=jax.ShapeDtypeStruct((R, Dp), jnp.float32),
        grid=(R // tR,),
        in_specs=[
            pl.BlockSpec((tR, Dw), lambda i: (i, 0)),
            pl.BlockSpec((Dw, Dp), lambda i: (0, 0)),
            pl.BlockSpec((1, Dp), lambda i: (0, 0)),
        ],
        out_specs=pl.BlockSpec((tR, Dp), lambda i: (i, 0)),
        compiler_params=_mosaic_params("parallel"),
    )(x.reshape(R, Dw), w_call, b_call.reshape(1, Dp))
    return y.reshape(B, L, Dout)   # free row-major un-packing


# ----------------------------------------------------------------------------
# Kernel 2: Linear projection fused with L2 normalization (cfeat_proj + the
#           norm_feat of coarse_matching); bf16 output feeds the matcher.
# ----------------------------------------------------------------------------
def _linear_norm_kernel(x_ref, w_ref, b_ref, yn_ref):
    x = x_ref[...].astype(jnp.bfloat16)
    w = w_ref[...].astype(jnp.bfloat16)
    y = jnp.dot(x, w, preferred_element_type=jnp.float32) + b_ref[...]
    # norm_feat: f / (||f||_2 + 1e-6)
    inv = 1.0 / (jnp.sqrt(jnp.sum(y * y, axis=-1, keepdims=True)) + 1e-6)
    yn_ref[...] = (y * inv).astype(yn_ref.dtype)
    # TODO(synk): the un-normalized projection only feeds FinePreprocess, which
    # is an external (not emulated) module, so it is not written back to HBM.


def pallas_linear_norm(x, w, b, *, row_tile=2048):
    B, L, Din = x.shape
    Dout = w.shape[1]
    T = B * L
    tT = _pick_tile(T, row_tile)
    yn = pl.pallas_call(
        _linear_norm_kernel,
        out_shape=jax.ShapeDtypeStruct((T, Dout), jnp.bfloat16),
        grid=(T // tT,),
        in_specs=[
            pl.BlockSpec((tT, Din), lambda i: (i, 0)),
            pl.BlockSpec((Din, Dout), lambda i: (0, 0)),
            pl.BlockSpec((1, Dout), lambda i: (0, 0)),
        ],
        out_specs=pl.BlockSpec((tT, Dout), lambda i: (i, 0)),
        compiler_params=_mosaic_params("parallel"),
    )(x.reshape(T, Din), w, b.reshape(1, Dout))
    return yn.reshape(B, L, Dout)


# ----------------------------------------------------------------------------
# Kernel 3: fused point path.
#   c = pt_proj(x)           -> L2-normalized bf16 pt_cfeat output
#   pt_ffeat = pt_ffeat_proj(c) folded in the wrapper to a single 32->32
#   linear on x, evaluated lane-dense via the same 4-token packing trick.
# ----------------------------------------------------------------------------
def _pt_path_kernel(x_ref, xw_ref, w1_ref, b1_ref, wp_ref, bp_ref,
                    cn_ref, fp_ref):
    x = x_ref[...].astype(jnp.bfloat16)                        # (tT, pt_dim)
    c = jnp.dot(x, w1_ref[...].astype(jnp.bfloat16),
                preferred_element_type=jnp.float32) + b1_ref[...]   # (tT, 128)
    inv = 1.0 / (jnp.sqrt(jnp.sum(c * c, axis=-1, keepdims=True)) + 1e-6)
    cn_ref[...] = (c * inv).astype(cn_ref.dtype)               # bf16 normalized
    xw = xw_ref[...].astype(jnp.bfloat16)                      # (tR, pack*pt_dim)
    f = jnp.dot(xw, wp_ref[...].astype(jnp.bfloat16),
                preferred_element_type=jnp.float32) + bp_ref[...]   # (tR, 128)
    fp_ref[...] = f.astype(fp_ref.dtype)


def pallas_pt_path(pt_feat, w1, b1, w_fold, b_fold, *, row_tile=2048):
    """pt_feat: [B, N, pt_dim]; w1: pt_proj weight; (w_fold, b_fold): the whole
    pt_proj->Linear->Linear chain folded to a single pt_dim->ffeat linear."""
    B, N, Din = pt_feat.shape
    Dc = w1.shape[1]
    Df = w_fold.shape[1]
    T = B * N
    pack = 4 if (Df * 4 == 128 and T % 4 == 0) else 1
    R = T // pack
    Dw, Dp = pack * Din, pack * Df
    if pack > 1:
        wp = jnp.kron(jnp.eye(pack, dtype=w_fold.dtype), w_fold)
        bp = jnp.tile(b_fold, pack)
    else:
        wp, bp = w_fold, b_fold
    tR = _pick_tile(R, max(8, row_tile // pack))
    tT = pack * tR
    x2d = pt_feat.reshape(T, Din)
    xw2d = pt_feat.reshape(R, Dw)   # same bytes, wide row-major view
    cn, fp = pl.pallas_call(
        _pt_path_kernel,
        out_shape=(jax.ShapeDtypeStruct((T, Dc), jnp.bfloat16),
                   jax.ShapeDtypeStruct((R, Dp), jnp.float32)),
        grid=(R // tR,),
        in_specs=[
            pl.BlockSpec((tT, Din), lambda i: (i, 0)),
            pl.BlockSpec((tR, Dw), lambda i: (i, 0)),
            pl.BlockSpec((Din, Dc), lambda i: (0, 0)),
            pl.BlockSpec((1, Dc), lambda i: (0, 0)),
            pl.BlockSpec((Dw, Dp), lambda i: (0, 0)),
            pl.BlockSpec((1, Dp), lambda i: (0, 0)),
        ],
        out_specs=(pl.BlockSpec((tT, Dc), lambda i: (i, 0)),
                   pl.BlockSpec((tR, Dp), lambda i: (i, 0))),
        compiler_params=_mosaic_params("parallel"),
    )(x2d, xw2d, w1, b1.reshape(1, Dc), wp, bp.reshape(1, Dp))
    return cn.reshape(B, N, Dc), fp.reshape(B, N, Df)


# ----------------------------------------------------------------------------
# Kernels 4+5: coarse matching, grid (B, M-tile) with the M tile innermost so
# the (N, D) point block / pt bias / colsum / temp stay VMEM-resident.
#   sim = <im_n, pt_n> * temp; masked fill; softmax(dim=1) * softmax(dim=2)
# For valid entries sim*temp is ~[-temp, temp] (bf16 rounding can push |sim|
# slightly above 1 -> mildly positive logits; exp stays finite so do NOT "fix"
# this with a max-subtract). Masked entries carry an additive -1e9 bias and
# underflow to exactly 0 under exp.
# ----------------------------------------------------------------------------
def _masked_exp(imn, ptn, temp, im_bias, pt_bias):
    sim = jax.lax.dot_general(
        imn.astype(jnp.bfloat16), ptn.astype(jnp.bfloat16),
        (((1,), (1,)), ((), ())), preferred_element_type=jnp.float32)  # (tM, N)
    logits = sim * temp - temp + im_bias + pt_bias
    return jnp.exp(logits)


def _colsum_kernel(imn_ref, ptn_ref, imb_ref, ptb_ref, temp_ref, csum_ref):
    # Column sums accumulate in VMEM across the (arbitrary) M-tile axis.
    @pl.when(pl.program_id(1) == 0)
    def _():
        csum_ref[...] = jnp.zeros_like(csum_ref)
    e = _masked_exp(imn_ref[0], ptn_ref[0], temp_ref[0],
                    imb_ref[0], ptb_ref[0])
    csum_ref[0] += jnp.sum(e, axis=0, keepdims=True)           # (1, N)


def _conf_kernel(uniform, imn_ref, ptn_ref, imb_ref, ptb_ref, temp_ref,
                 csum_ref, conf_ref):
    e = _masked_exp(imn_ref[0], ptn_ref[0], temp_ref[0],
                    imb_ref[0], ptb_ref[0])
    rowsum = jnp.sum(e, axis=-1, keepdims=True)                # (tM, 1)
    colsum = csum_ref[0]                                       # (1, N)
    inv_r = pl.reciprocal(jnp.where(rowsum > 0.0, rowsum, 1.0), approx=True)
    inv_c = pl.reciprocal(jnp.where(colsum > 0.0, colsum, 1.0), approx=True)
    conf = (e * inv_r) * (e * inv_c)
    # Fully-masked row AND column -> reference dual softmax yields 1/(M*N).
    conf = jnp.where(jnp.logical_and(rowsum == 0.0, colsum == 0.0),
                     uniform, conf)
    conf_ref[0] = conf.astype(conf_ref.dtype)


def _pick_m_tile(M, N, D):
    # Size pass-2 working set (conf out double-buffer + exp/conf temporaries +
    # im feature tile) against the generation-aware VMEM budget.
    budget = _VMEM_LIMIT // 2
    per_row = 6 * N * 4 + 2 * D * 2
    cap = max(8, budget // max(per_row, 1))
    return _pick_tile(M, min(256, cap))


def pallas_coarse_matching(im_feat_n, pt_feat_n, im_mask, pt_mask, temperature):
    """im_feat_n: [B, M, D] L2-normalized bf16; pt_feat_n: [B, N, D] bf16."""
    B, M, D = im_feat_n.shape
    N = pt_feat_n.shape[1]
    tM = _pick_m_tile(M, N, D)
    nM = M // tM

    # masks as additive biases: 0 where valid, -1e9 where masked.
    # TODO(synk): im_bias keeps a lane-width-1 (1,tM,1) block (lane-sparse DMA,
    # padded VMEM tile); avoiding it needs an in-kernel lane<->sublane relayout.
    im_bias = (-1e9 * (1.0 - im_mask.astype(jnp.float32))).reshape(B, M, 1)
    pt_bias = (-1e9 * (1.0 - pt_mask.astype(jnp.float32))).reshape(B, 1, N)
    # learnable temperature: (1,) f32 scalar in SMEM (traced -> no recompile).
    temp = jnp.asarray(temperature, jnp.float32).reshape(1)
    smem_spec = pl.BlockSpec(memory_space=pltpu.MemorySpace.SMEM)

    # pass 1: column sums of the masked softmax numerator, accumulated in VMEM.
    colsum = pl.pallas_call(
        _colsum_kernel,
        out_shape=jax.ShapeDtypeStruct((B, 1, N), jnp.float32),
        grid=(B, nM),
        in_specs=[
            pl.BlockSpec((1, tM, D), lambda b, i: (b, i, 0)),
            pl.BlockSpec((1, N, D), lambda b, i: (b, 0, 0)),
            pl.BlockSpec((1, tM, 1), lambda b, i: (b, i, 0)),
            pl.BlockSpec((1, 1, N), lambda b, i: (b, 0, 0)),
            smem_spec,
        ],
        out_specs=pl.BlockSpec((1, 1, N), lambda b, i: (b, 0, 0)),
        compiler_params=_mosaic_params("parallel", "arbitrary"),
    )(im_feat_n, pt_feat_n, im_bias, pt_bias, temp)

    # pass 2: recompute the cheap sim/exp tile and normalize by row/col sums.
    conf = pl.pallas_call(
        functools.partial(_conf_kernel, 1.0 / float(M * N)),
        out_shape=jax.ShapeDtypeStruct((B, M, N), jnp.float32),
        grid=(B, nM),
        in_specs=[
            pl.BlockSpec((1, tM, D), lambda b, i: (b, i, 0)),
            pl.BlockSpec((1, N, D), lambda b, i: (b, 0, 0)),
            pl.BlockSpec((1, tM, 1), lambda b, i: (b, i, 0)),
            pl.BlockSpec((1, 1, N), lambda b, i: (b, 0, 0)),
            smem_spec,
            pl.BlockSpec((1, 1, N), lambda b, i: (b, 0, 0)),
        ],
        out_specs=pl.BlockSpec((1, tM, N), lambda b, i: (b, i, 0)),
        compiler_params=_mosaic_params("parallel", "parallel"),
    )(im_feat_n, pt_feat_n, im_bias, pt_bias, temp, colsum)
    return conf


# ----------------------------------------------------------------------------
# Model wrapper (parameter init + forward_match equivalent for this config)
# ----------------------------------------------------------------------------
class NeRFMatcherMSPallas:
    CFEAT_DIM = 128
    FFEAT_DIM = 32
    BACKBONE_DIM = (96, 48)   # (coarse, fine) backbone channels
    PT_DIM = 32

    def __init__(self, key):
        ks = jax.random.split(key, 10)

        def lin_init(kw, kb, din, dout):
            s = 1.0 / jnp.sqrt(jnp.float32(din))
            w = jax.random.uniform(kw, (din, dout), jnp.float32, -s, s)
            b = jax.random.uniform(kb, (dout,), jnp.float32, -s, s)
            return w, b

        self.cfeat_w, self.cfeat_b = lin_init(ks[0], ks[1],
                                              self.BACKBONE_DIM[0], self.CFEAT_DIM)
        self.ffeat_w, self.ffeat_b = lin_init(ks[2], ks[3],
                                              self.BACKBONE_DIM[1], self.FFEAT_DIM)
        self.pt_w, self.pt_b = lin_init(ks[4], ks[5], self.PT_DIM, self.CFEAT_DIM)
        self.ptf1_w, self.ptf1_b = lin_init(ks[6], ks[7],
                                            self.CFEAT_DIM, self.FFEAT_DIM)
        self.ptf2_w, self.ptf2_b = lin_init(ks[8], ks[9],
                                            self.FFEAT_DIM, self.FFEAT_DIM)
        # pt_proj -> Linear -> Linear has no nonlinearity: fold to one 32->32
        # linear on the raw point features (f32 fold, single bf16 matmul).
        self.ptf_fold_w = self.pt_w @ self.ptf1_w @ self.ptf2_w
        self.ptf_fold_b = ((self.pt_b @ self.ptf1_w + self.ptf1_b)
                           @ self.ptf2_w + self.ptf2_b)
        # learnable temperature (temp_type='mul'), passed to kernels as data.
        self.temperature = jnp.float32(10.0)

    def forward_match(self, im_cfeat_raw, im_ffeat_raw, pt_feat, pt3d,
                      im_mask, pt_mask):
        # --- extract_im_feat ------------------------------------------------
        # TODO(synk): backbone conv stack not emulated; im_cfeat_raw/im_ffeat_raw
        # stand in for backbone.forward(img) outputs, already in (B, HW, C).
        im_cfeat_n = pallas_linear_norm(im_cfeat_raw, self.cfeat_w, self.cfeat_b)
        im_ffeat = pallas_linear_packed(im_ffeat_raw, self.ffeat_w, self.ffeat_b)
        # TODO(synk): im_pe (PositionEncodingSine) and im_sa disabled in config.

        # --- extract_pt_feat + pt_ffeat head (fused) ------------------------
        pt_cfeat_n, pt_ffeat = pallas_pt_path(
            pt_feat, self.pt_w, self.pt_b, self.ptf_fold_w, self.ptf_fold_b)
        # TODO(synk): pt_pe (FourierEmbedding), pt_sa and coarse_former disabled.

        # --- coarse_matching ------------------------------------------------
        conf_matrix = pallas_coarse_matching(
            im_cfeat_n, pt_cfeat_n, im_mask, pt_mask, self.temperature)

        # TODO(synk): extract_mutual_matches / FinePreprocess / fine_sa /
        # FineMatching (expec_f, mpt2d_f) are external undefined modules.
        # NOTE: 'im_cfeat'/'pt_cfeat' are the L2-normalized (bf16) matcher
        # features returned by coarse_matching, not the un-normalized cfeat
        # consumed by FinePreprocess.
        return dict(conf_matrix=conf_matrix,
                    im_cfeat=im_cfeat_n,
                    pt_cfeat=pt_cfeat_n,
                    im_ffeat=im_ffeat,
                    pt_ffeat=pt_ffeat)


# ----------------------------------------------------------------------------
# Pure-JAX reference of the implemented path (mirrors the kernels' bf16 MXU
# operand precision with f32 accumulation) for correctness checking.
# ----------------------------------------------------------------------------
def _ref_forward(m, im_cfeat_raw, im_ffeat_raw, pt_feat, im_mask, pt_mask):
    bf16 = jnp.bfloat16

    def lin(x, w, b):
        return jnp.dot(x.astype(bf16), w.astype(bf16),
                       preferred_element_type=jnp.float32) + b

    imc = lin(im_cfeat_raw, m.cfeat_w, m.cfeat_b)
    imf = lin(im_ffeat_raw, m.ffeat_w, m.ffeat_b)
    ptc = lin(pt_feat, m.pt_w, m.pt_b)
    ptf = lin(lin(ptc, m.ptf1_w, m.ptf1_b), m.ptf2_w, m.ptf2_b)
    norm = lambda f: f / (jnp.linalg.norm(f, axis=-1, keepdims=True) + 1e-6)
    imn, ptn = norm(imc).astype(bf16), norm(ptc).astype(bf16)
    sim = jnp.einsum('bmd,bnd->bmn', imn, ptn,
                     preferred_element_type=jnp.float32) * m.temperature
    valid = (im_mask[..., None] * pt_mask[:, None]) > 0
    sim = jnp.where(valid, sim, -1.0e9)
    conf = jax.nn.softmax(sim, axis=1) * jax.nn.softmax(sim, axis=2)
    return dict(conf_matrix=conf, im_cfeat=imn, pt_cfeat=ptn,
                im_ffeat=imf, pt_ffeat=ptf)


def _close(a, b, atol):
    return jnp.allclose(jnp.asarray(a, jnp.float32),
                        jnp.asarray(b, jnp.float32), atol=atol)


if __name__ == "__main__":
    key = jax.random.PRNGKey(0)
    k_model, k_cf, k_ff, k_pt, k_p3 = jax.random.split(key, 5)

    model = NeRFMatcherMSPallas(k_model)

    # image [B, 3, 32, 32] -> coarse 4x4 (ds=8) -> M=16, fine 16x16 (ds=2) -> 256
    B, M, Mf, N = 2, 16, 256, 16
    im_cfeat_raw = jax.random.normal(k_cf, (B, M, model.BACKBONE_DIM[0]), jnp.float32)
    im_ffeat_raw = jax.random.normal(k_ff, (B, Mf, model.BACKBONE_DIM[1]), jnp.float32)
    pt_feat = jax.random.normal(k_pt, (B, N, model.PT_DIM), jnp.float32)
    pt3d = jax.random.normal(k_p3, (B, N, 3), jnp.float32)
    im_mask = jnp.ones((B, M), jnp.float32).at[:, M - 2:].set(0.0)
    pt_mask = jnp.ones((B, N), jnp.float32).at[:, N - 3:].set(0.0)

    preds = model.forward_match(im_cfeat_raw, im_ffeat_raw, pt_feat, pt3d,
                                im_mask, pt_mask)
    jax.block_until_ready(preds)

    ref = _ref_forward(model, im_cfeat_raw, im_ffeat_raw, pt_feat,
                       im_mask, pt_mask)
    assert preds["conf_matrix"].shape == (B, M, N)
    assert preds["pt_ffeat"].shape == (B, N, model.FFEAT_DIM)
    assert _close(preds["conf_matrix"], ref["conf_matrix"], 2e-3), \
        "conf_matrix mismatch vs reference"
    assert _close(preds["im_cfeat"], ref["im_cfeat"], 2e-3), \
        "im_cfeat (normalized) mismatch vs reference"
    assert _close(preds["pt_cfeat"], ref["pt_cfeat"], 2e-3), \
        "pt_cfeat (normalized) mismatch vs reference"
    assert _close(preds["im_ffeat"], ref["im_ffeat"], 1e-2), \
        "im_ffeat mismatch vs reference"
    assert _close(preds["pt_ffeat"], ref["pt_ffeat"], 1e-2), \
        "pt_ffeat mismatch vs reference"

    print("KERNEL_OK")
</pallas_src>

<mosaic_0001>
module attributes {stable_mosaic.version = 11 : i64} {
  func.func @_linear_norm_kernel(%arg0: i32, %arg1: memref<32x96xf32, #tpu.memory_space<vmem>>, %arg2: memref<96x128xf32, #tpu.memory_space<vmem>>, %arg3: memref<1x128xf32, #tpu.memory_space<vmem>>, %arg4: memref<32x128xbf16, #tpu.memory_space<vmem>>) attributes {dimension_semantics = [#tpu.dimension_semantics<parallel>], iteration_bounds = array<i64: 1>, scalar_prefetch = 0 : i64, scratch_operands = 0 : i64, tpu.core_type = #tpu.core_type<tc>, window_params = [{transform_indices = @transform_0, window_bounds = array<i64: 32, 96>}, {pipeline_mode = #tpu.pipeline_mode<synchronous>, transform_indices = @transform_1, window_bounds = array<i64: 96, 128>}, {pipeline_mode = #tpu.pipeline_mode<synchronous>, transform_indices = @transform_2, window_bounds = array<i64: 1, 128>}, {transform_indices = @transform_3, window_bounds = array<i64: 32, 128>}]} {
    %c0 = arith.constant 0 : index
    %c0_0 = arith.constant 0 : index
    %0 = vector.load %arg1[%c0, %c0_0] : memref<32x96xf32, #tpu.memory_space<vmem>>, vector<32x96xf32>
    %1 = arith.truncf %0 : vector<32x96xf32> to vector<32x96xbf16>
    %c0_1 = arith.constant 0 : index
    %c0_2 = arith.constant 0 : index
    %2 = vector.load %arg2[%c0_1, %c0_2] : memref<96x128xf32, #tpu.memory_space<vmem>>, vector<96x128xf32>
    %3 = arith.truncf %2 : vector<96x128xf32> to vector<96x128xbf16>
    %cst = arith.constant dense<0.000000e+00> : vector<32x128xf32>
    %4 = tpu.matmul %1, %3, %cst {dimension_numbers = #tpu.dot_dimension_numbers<[1], [0], [0], [1], [0, 0, 1, 1], [], []>} : vector<32x96xbf16>, vector<96x128xbf16>, vector<32x128xf32> -> vector<32x128xf32>
    %c0_3 = arith.constant 0 : index
    %c0_4 = arith.constant 0 : index
    %5 = vector.load %arg3[%c0_3, %c0_4] : memref<1x128xf32, #tpu.memory_space<vmem>>, vector<1x128xf32>
    %6 = vector.broadcast %5 : vector<1x128xf32> to vector<32x128xf32>
    %7 = arith.addf %4, %6 : vector<32x128xf32>
    %8 = arith.mulf %7, %7 : vector<32x128xf32>
    %cst_5 = arith.constant dense<0.000000e+00> : vector<32xf32>
    %9 = vector.multi_reduction <add>, %8, %cst_5 [1] : vector<32x128xf32> to vector<32xf32>
    %10 = vector.shape_cast %9 : vector<32xf32> to vector<32x1xf32>
    %11 = math.sqrt %10 : vector<32x1xf32>
    %cst_6 = arith.constant 9.99999997E-7 : f32
    %12 = vector.broadcast %cst_6 : f32 to vector<32x1xf32>
    %13 = arith.addf %11, %12 : vector<32x1xf32>
    %cst_7 = arith.constant 1.000000e+00 : f32
    %14 = vector.broadcast %cst_7 : f32 to vector<32x1xf32>
    %15 = arith.divf %14, %13 : vector<32x1xf32>
    %16 = vector.broadcast %15 : vector<32x1xf32> to vector<32x128xf32>
    %17 = arith.mulf %7, %16 : vector<32x128xf32>
    %18 = arith.truncf %17 : vector<32x128xf32> to vector<32x128xbf16>
    %c0_8 = arith.constant 0 : index
    %c0_9 = arith.constant 0 : index
    %19 = vector.load %arg4[%c0_8, %c0_9] : memref<32x128xbf16, #tpu.memory_space<vmem>>, vector<32x128xbf16>
    tpu.vector_store %arg4[%c0_8, %c0_9], %18 {strides = array<i32>} : memref<32x128xbf16, #tpu.memory_space<vmem>>, vector<32x128xbf16>,
    return
  }
  func.func @transform_0(%arg0: i32) -> (i32, i32) {
    %c0_i32 = arith.constant 0 : i32
    %c0_i32_0 = arith.constant 0 : i32
    return %arg0, %c0_i32 : i32, i32
  }
  func.func @transform_1(%arg0: i32) -> (i32, i32) {
    %c0_i32 = arith.constant 0 : i32
    %c0_i32_0 = arith.constant 0 : i32
    %c0_i32_1 = arith.constant 0 : i32
    return %c0_i32, %c0_i32_0 : i32, i32
  }
  func.func @transform_2(%arg0: i32) -> (i32, i32) {
    %c0_i32 = arith.constant 0 : i32
    %c0_i32_0 = arith.constant 0 : i32
    %c0_i32_1 = arith.constant 0 : i32
    return %c0_i32, %c0_i32_0 : i32, i32
  }
  func.func @transform_3(%arg0: i32) -> (i32, i32) {
    %c0_i32 = arith.constant 0 : i32
    %c0_i32_0 = arith.constant 0 : i32
    return %arg0, %c0_i32 : i32, i32
  }
}

</mosaic_0001>

<llo_original>
// kernel: tpu_custom_call.1
$region0: #{tpu_custom_call.1}
  #allocation0 [shape = 'u32[]', space=smem, size = 0x4, offset = 0x4, fixed_abs, tag = 'smem constant byte address 0x4 - core index']
  #allocation1 [shape = 'u32[144,128]{1,0:T(1,128)}', space=vmem, size = 0x12000, scoped, tag = 'internal scratch']
  %s0 = inlined_call_operand.hbm [shape: f32[32,96], index: 0, kind: input, shape index: {}]
  %s1 = inlined_call_operand.hbm [shape: f32[96,128], index: 1, kind: input, shape index: {}]
  %s2 = inlined_call_operand.vmem [shape: f32[1,128], index: 2, kind: input, shape index: {}]
  %s3 = inlined_call_operand.hbm [shape: bf16[32,128], index: 3, kind: output, shape index: {}]
  %s4 = sld [smem:[#allocation0]]
  $region30: #{tpu_custom_call.1} parent=0
    _
  %s6 = ssub.s32 1, %s4
  %s7 = scalar_select 0, %s6, %s4
  $region1: #{tpu_custom_call.1} parent=0
    #allocation2 [shape = 'u8[16384]{0}', space=vmem, size = 0x4000, scoped, tag = 'input window, operand 0, single buffered']
    #allocation3 [shape = 's32[1]{0}', space=sflag, size = 0x4, scoped, tag = 'scoped memory for tpu_custom_call.1']
    #allocation4 [shape = 's32[1]{0}', space=sflag, size = 0x4, scoped, tag = 'scoped memory for tpu_custom_call.1']
    #allocation5 [shape = 'u8[49152]{0}', space=vmem, size = 0xc000, scoped, tag = 'input window, operand 1, single buffered']
    #allocation6 [shape = 's32[1]{0}', space=sflag, size = 0x4, scoped, tag = 'scoped memory for tpu_custom_call.1']
    #allocation7 [shape = 'u8[8192]{0}', space=vmem, size = 0x2000, scoped, tag = 'output window, operand 0, single buffered']
    %8 = vsyncpa [#allocation3], 0
    %9 = vsyncpa [#allocation6], 0
    %10 = vsyncpa [#allocation4], 0
    // Predicated region
    $region2: #{tpu_custom_call.1} parent=1 // pred_check
      _
    $region3: #{tpu_custom_call.1} parent=1 // pred_check_branch
      %12 = sbr.rel (0) target = $region5
    $region4: #{tpu_custom_call.1} parent=1 // pred_region
      %s14 = ssub.s32 512, 512
      %15 = vsyncadd [#allocation3], %s14
      %s16 = sshll.u32 [#allocation2], 4
      %s17 = int_to_ptr.vmem [resolvable:$true] %s16
      %22 = dma.hbm_to_vmem [thread:$0]  %s0, 512, %s17, [#allocation3], 128, 128, 8
    $region5: #{tpu_custom_call.1} parent=1 // pred_fallthru
      _
    // Predicated region
    $region6: #{tpu_custom_call.1} parent=1 // pred_check
      _
    $region7: #{tpu_custom_call.1} parent=1 // pred_check_branch
      %24 = sbr.rel (0) target = $region9
    $region8: #{tpu_custom_call.1} parent=1 // pred_region
      %s26 = ssub.s32 1536, 1536
      %27 = vsyncadd [#allocation6], %s26
      %s28 = sshll.u32 [#allocation5], 4
      %s29 = int_to_ptr.vmem [resolvable:$true] %s28
      %34 = dma.hbm_to_vmem [thread:$0]  %s1, 1536, %s29, [#allocation6], 128, 128, 8
    $region9: #{tpu_custom_call.1} parent=1 // pred_fallthru
      _
    // Predicated region
    $region10: #{tpu_custom_call.1} parent=1 // pred_check
      _
    $region11: #{tpu_custom_call.1} parent=1 // pred_check_branch
      %36 = sbr.rel (0) target = $region13
    $region12: #{tpu_custom_call.1} parent=1 // pred_region
      _
    $region13: #{tpu_custom_call.1} parent=1 // pred_fallthru
      _
    // Predicated region
    $region14: #{tpu_custom_call.1} parent=1 // pred_check
      _
    $region15: #{tpu_custom_call.1} parent=1 // pred_check_branch
      %38 = sbr.rel (0) target = $region17
    $region16: #{tpu_custom_call.1} parent=1 // pred_region
      %39 = dma.done [#allocation3], 512
    $region17: #{tpu_custom_call.1} parent=1 // pred_fallthru
      _
    // Predicated region
    $region18: #{tpu_custom_call.1} parent=1 // pred_check
      _
    $region19: #{tpu_custom_call.1} parent=1 // pred_check_branch
      %41 = sbr.rel (0) target = $region21
    $region20: #{tpu_custom_call.1} parent=1 // pred_region
      %42 = dma.done [#allocation6], 1536
    $region21: #{tpu_custom_call.1} parent=1 // pred_fallthru
      _
    %v44 = vld [vmem:[#allocation2] sm:$0xff]
    %v45 = vld [vmem:[#allocation2 + $0x8] sm:$0xff]
    %v46 = vld [vmem:[#allocation2 + $0x10] sm:$0xff]
    %v47 = vld [vmem:[#allocation2 + $0x18] sm:$0xff]
    %v48 = vpack.c.bf16 %v45, %v44
    %v49 = vpack.c.bf16 %v47, %v46
    %v50 = vld [vmem:[#allocation5] sm:$0xff]
    %v51 = vld [vmem:[#allocation5 + $0x8] sm:$0xff]
    %v52 = vld [vmem:[#allocation5 + $0x10] sm:$0xff]
    %v53 = vld [vmem:[#allocation5 + $0x18] sm:$0xff]
    %v54 = vld [vmem:[#allocation5 + $0x20] sm:$0xff]
    %v55 = vld [vmem:[#allocation5 + $0x28] sm:$0xff]
    %v56 = vld [vmem:[#allocation5 + $0x30] sm:$0xff]
    %v57 = vld [vmem:[#allocation5 + $0x38] sm:$0xff]
    %v58 = vld [vmem:[#allocation5 + $0x40] sm:$0xff]
    %v59 = vld [vmem:[#allocation5 + $0x48] sm:$0xff]
    %v60 = vld [vmem:[#allocation5 + $0x50] sm:$0xff]
    %v61 = vld [vmem:[#allocation5 + $0x58] sm:$0xff]
    %v62 = vpack.c.bf16 %v51, %v50
    %v63 = vpack.c.bf16 %v53, %v52
    %v64 = vpack.c.bf16 %v55, %v54
    %v65 = vpack.c.bf16 %v57, %v56
    %v66 = vpack.c.bf16 %v59, %v58
    %v67 = vpack.c.bf16 %v61, %v60
    %v68 = vld [vmem:[%s2] sm:$0x1]
    %v70 = vlaneseq
    %v71 = vshrl.u32 %v70, 7
    %v72 = vsub.s32 0, %v71
    %v73 = vrot.slane %v68, %v72
    %vm75 = vcmask 785408
    %v77 = vsel %vm75, %v48, 0
    %v80 = vsel %vm75, %v49, 0
    %82 = vmatprep.subr.bf16.mxu0 0
    %83 = vmatpush1.bf16.msra.mxu0 0
    %84 = vmatprep.subr.bf16.mxu0 0
    %85 = vmatpush1.bf16.msra.mxu0 0
    %86 = vmatprep.subr.bf16.mxu0 0
    %87 = vmatpush1.bf16.msra.mxu0 %v67
    %88 = vmatprep.subr.bf16.mxu0 0
    %89 = vmatpush1.bf16.msra.mxu0 %v66
    %90 = vmatprep.subr.bf16.mxu0 0
    %91 = vmatpush1.bf16.msra.mxu0 %v65
    %92 = vmatprep.subr.bf16.mxu0 0
    %93 = vmatpush1.bf16.msra.mxu0 %v64
    %94 = vmatprep.subr.bf16.mxu0 0
    %95 = vmatpush1.bf16.msra.mxu0 %v63
    %96 = vmatprep.subr.bf16.mxu0 0
    %97 = vmatpush1.bf16.msra.mxu0 %v62
    %98 = vmatprep.subr.bf16.mxu0 0
    %99 = vmatpush2.bf16.msra.mxu0 0
    %100 = vmatprep.subr.bf16.mxu0 0
    %101 = vmatpush2.bf16.msra.mxu0 0
    %102 = vmatprep.subr.bf16.mxu0 0
    %103 = vmatpush2.bf16.msra.mxu0 0
    %104 = vmatprep.subr.bf16.mxu0 0
    %105 = vmatpush2.bf16.msra.mxu0 0
    %106 = vmatprep.subr.bf16.mxu0 0
    %107 = vmatpush2.bf16.msra.mxu0 0
    %108 = vmatprep.subr.bf16.mxu0 0
    %109 = vmatpush2.bf16.msra.mxu0 0
    %110 = vmatprep.subr.bf16.mxu0 0
    %111 = vmatpush2.bf16.msra.mxu0 0
    %112 = vmatprep.subr.bf16.mxu0 0
    %113 = vmatpush2.bf16.msra.mxu0 0
    %114 = vmatprep.mubr.bf16.mxu0 0
    %115 = vmatmul.mubr.bf16.gmra.mxu0 %v77
    %v116 = vpop.f32.mrf.mxu0
    %v117 = vadd.f32 %v73, %v116
    %v118 = vpop.f32.mrf.mxu0
    %v119 = vpop.f32.mrf.mxu0
    %v120 = vadd.f32 %v73, %v119
    %v121 = vpop.f32.mrf.mxu0
    %122 = vmatprep.mubr.bf16.mxu0 0
    %123 = vmatmul.mubr.bf16.gmra.mxu0 %v80
    %v124 = vpop.f32.mrf.mxu0
    %v125 = vadd.f32 %v73, %v124
    %v126 = vpop.f32.mrf.mxu0
    %v127 = vpop.f32.mrf.mxu0
    %v128 = vadd.f32 %v73, %v127
    %v129 = vpop.f32.mrf.mxu0
    %130 = vdwg.mxu0
    %v131 = vmul.f32 %v117, %v117
    %v132 = vmul.f32 %v120, %v120
    %v133 = vmul.f32 %v125, %v125
    %v134 = vmul.f32 %v128, %v128
    %135 = vadd.xlane.f32.xlu0 %v131
    %v136 = vpop.xlane.xlu0 %135
    %137 = vadd.xlane.f32.xlu0 %v132
    %v138 = vpop.xlane.xlu0 %137
    %139 = vadd.xlane.f32.xlu0 %v133
    %v140 = vpop.xlane.xlu0 %139
    %141 = vadd.xlane.f32.xlu0 %v134
    %v142 = vpop.xlane.xlu0 %141
    %v143 = vrsqrt.pop %v136
    %v144 = vmul.f32 %v136, %v143
    %vm145 = vcmp.eq.f32.partialorder %v136, inf
    %v146 = vsel %vm145, %v136, %v144
    %vm147 = vcmp.eq.f32.partialorder %v136, 0.0
    %v148 = vand.u32 %v136, 2147483648
    %v149 = vsel %vm147, %v148, %v146
    %v150 = vrsqrt.pop %v138
    %v151 = vmul.f32 %v138, %v150
    %vm152 = vcmp.eq.f32.partialorder %v138, inf
    %v153 = vsel %vm152, %v138, %v151
    %vm154 = vcmp.eq.f32.partialorder %v138, 0.0
    %v155 = vand.u32 %v138, 2147483648
    %v156 = vsel %vm154, %v155, %v153
    %v157 = vrsqrt.pop %v140
    %v158 = vmul.f32 %v140, %v157
    %vm159 = vcmp.eq.f32.partialorder %v140, inf
    %v160 = vsel %vm159, %v140, %v158
    %vm161 = vcmp.eq.f32.partialorder %v140, 0.0
    %v162 = vand.u32 %v140, 2147483648
    %v163 = vsel %vm161, %v162, %v160
    %v164 = vrsqrt.pop %v142
    %v165 = vmul.f32 %v142, %v164
    %vm166 = vcmp.eq.f32.partialorder %v142, inf
    %v167 = vsel %vm166, %v142, %v165
    %vm168 = vcmp.eq.f32.partialorder %v142, 0.0
    %v169 = vand.u32 %v142, 2147483648
    %v170 = vsel %vm168, %v169, %v167
    %v171 = vadd.f32 %v149, 1e-06
    %v172 = vadd.f32 %v156, 1e-06
    %v173 = vadd.f32 %v163, 1e-06
    %v174 = vadd.f32 %v170, 1e-06
    %v175 = vrcp.pop %v171
    %v176 = vmul.f32 1.0, %v175
    %v177 = vrcp.pop %v172
    %v178 = vmul.f32 1.0, %v177
    %v179 = vrcp.pop %v173
    %v180 = vmul.f32 1.0, %v179
    %v181 = vrcp.pop %v174
    %v182 = vmul.f32 1.0, %v181
    %v183 = vmul.f32 %v117, %v176
    %v184 = vmul.f32 %v120, %v178
    %v185 = vmul.f32 %v125, %v180
    %v186 = vmul.f32 %v128, %v182
    %v187 = vpack.c.bf16 %v184, %v183
    %v188 = vpack.c.bf16 %v186, %v185
    %v191 = vunpack.c.l.b16 %v187
    %v192 = vunpack.c.h.b16 %v187
    %v193 = vunpack.c.l.b16 %v188
    %v194 = vunpack.c.h.b16 %v188
    %v195 = vpack.c.b16 %v191, %v191
    %v196 = vpack.c.b16 %v192, %v192
    %v197 = vpack.c.b16 %v193, %v193
    %v198 = vpack.c.b16 %v194, %v194
    %203 = vst [vmem:[#allocation7] sm:$0xf] %v195
    %204 = vst [vmem:[#allocation7 + $0x4] sm:$0xf] %v196
    %205 = vst [vmem:[#allocation7 + $0x8] sm:$0xf] %v197
    %206 = vst [vmem:[#allocation7 + $0xc] sm:$0xf] %v198
    // Predicated region
    $region22: #{tpu_custom_call.1} parent=1 // pred_check
      _
    $region23: #{tpu_custom_call.1} parent=1 // pred_check_branch
      %208 = sbr.rel (0) target = $region25
    $region24: #{tpu_custom_call.1} parent=1 // pred_region
      %s210 = ssub.s32 256, 256
      %211 = vsyncadd [#allocation4], %s210
      %s212 = sshll.u32 [#allocation7], 4
      %s213 = int_to_ptr.vmem [resolvable:$true] %s212
      %218 = dma.vmem_to_hbm [thread:$0]  %s213, 256, %s3, [#allocation4], 64, 64, 4
    $region25: #{tpu_custom_call.1} parent=1 // pred_fallthru
      _
    // Predicated region
    $region26: #{tpu_custom_call.1} parent=1 // pred_check
      _
    $region27: #{tpu_custom_call.1} parent=1 // pred_check_branch
      %220 = sbr.rel (0) target = $region29
    $region28: #{tpu_custom_call.1} parent=1 // pred_region
      %221 = dma.done [#allocation4], 256
    $region29: #{tpu_custom_call.1} parent=1 // pred_fallthru
      _
    %222 = vsyncpa [#allocation3], 1
    %223 = vsyncpa [#allocation6], 1
    %224 = vsyncpa [#allocation4], 1

</llo_original>
